<compile_context>
chip_gen: v7x
topology: tpu7x:2x2x1
jax: 0.10.0
libtpu: 0.0.40
codegen_flags: <defaults>
</compile_context>

<pallas_src>
import functools
import math

import numpy as np

import jax
import jax.numpy as jnp
from jax.experimental import pallas as pl
from jax.experimental.pallas import tpu as pltpu


# --------------------------------------------------------------------------- #
# Kernel
# --------------------------------------------------------------------------- #
def _pe_kernel(pos_off_ref, inv_freq_ref, phase_ref, o_ref, *, rows_tile: int,
               lanes_per_pos: int):
    """One (rows_tile, W) tile of the packed PE table.

    Lane j of row r encodes position (r * L + j // fea), column (j % fea),
    where L = lanes_per_pos and all per-lane constants arrive via the three
    (1, W) input rows.
    """
    t = pl.program_id(0)
    row = jax.lax.broadcasted_iota(jnp.int32, (rows_tile, 1), 0)
    base = (t * rows_tile + row) * lanes_per_pos            # (rows_tile, 1) int32
    pos = base.astype(jnp.float32) + pos_off_ref[...]       # (rows_tile, W)
    # cos(a) == sin(a + pi/2): single transcendental per element.
    angle = pos * inv_freq_ref[...] + phase_ref[...]
    o_ref[...] = jnp.sin(angle).astype(o_ref.dtype)


# --------------------------------------------------------------------------- #
# Tiling helpers
# --------------------------------------------------------------------------- #
def _round_up(x: int, m: int) -> int:
    return -(-x // m) * m


def _num_tensorcores_per_chip() -> int:
    """2 on v7x (megacore grid sharding helps), else 1. Conservative default."""
    try:
        kind = jax.devices()[0].device_kind.lower()
    except Exception:
        return 1
    return 2 if "v7" in kind else 1


def _lane_packing(fea: int) -> tuple[int, int]:
    """Return (L, W): positions packed per row and packed row width."""
    if fea % 128 == 0:
        return 1, fea                      # already lane-dense
    width = math.lcm(fea, 128)
    if width <= 2048:
        return width // fea, width         # lane-dense packed layout
    return 1, fea                          # fall back (masked lanes)


def _pick_rows_tile(num_rows: int, width: int, itemsize: int,
                    num_cores: int) -> int:
    """Sublane-aligned row tile, ~4 MiB/buffer (v5e-safe), <= 2048 rows."""
    if num_rows <= 8:
        return num_rows                    # full-extent rows (satisfies (8,128))
    budget_bytes = 4 * 1024 * 1024
    cap = max(8, min(2048, (budget_bytes // (width * itemsize)) // 8 * 8))
    if num_cores <= 1:
        # Single TensorCore: the grid is a sequential loop, so just take the
        # biggest tile that fits (fewest ~0.35us/step overheads).
        return min(cap, _round_up(num_rows, 8))
    # Two TensorCores: smallest *even* step count whose tile fits the budget,
    # so the "parallel" grid axis splits evenly across cores.
    n = 2
    while True:
        tile = _round_up(-(-num_rows // n), 8)
        if tile <= cap:
            return tile
        n += 2


# --------------------------------------------------------------------------- #
# Table construction + wrapper
# --------------------------------------------------------------------------- #
def _build_pe_table(time: int, fea: int, dtype) -> jax.Array:
    lanes_per_pos, width = _lane_packing(fea)
    time_padded = _round_up(time, lanes_per_pos)
    num_rows = time_padded // lanes_per_pos
    itemsize = jnp.dtype(dtype).itemsize

    # Per-lane constants (computed once, outside the kernel).
    lane = np.arange(width)
    col = lane % fea
    parity = col & 1                                        # 0 -> sin, 1 -> cos
    pair = (col - parity).astype(np.float32)                # 2 * (col // 2)
    inv_freq = np.exp(pair * np.float32(-math.log(10000.0) / fea))
    phase = parity.astype(np.float32) * np.float32(math.pi / 2.0)
    pos_off = (lane // fea).astype(np.float32)

    pos_off = jnp.asarray(pos_off.reshape(1, width))
    inv_freq = jnp.asarray(inv_freq.reshape(1, width))
    phase = jnp.asarray(phase.reshape(1, width))

    rows_tile = _pick_rows_tile(num_rows, width, itemsize,
                                _num_tensorcores_per_chip())
    grid = (pl.cdiv(num_rows, rows_tile),)

    kernel = functools.partial(_pe_kernel, rows_tile=rows_tile,
                               lanes_per_pos=lanes_per_pos)

    elems = num_rows * width
    pe2d = pl.pallas_call(
        kernel,
        out_shape=jax.ShapeDtypeStruct((num_rows, width), dtype),
        grid=grid,
        in_specs=[pl.BlockSpec((1, width), lambda t: (0, 0))] * 3,
        out_specs=pl.BlockSpec((rows_tile, width), lambda t: (t, 0)),
        compiler_params=pltpu.CompilerParams(
            dimension_semantics=("parallel",)),
        cost_estimate=pl.CostEstimate(
            flops=3 * elems,
            transcendentals=elems,
            bytes_accessed=elems * itemsize + 3 * width * 4),
    )(pos_off, inv_freq, phase)

    # Row-major metadata reshape back to (time, fea); drop position padding.
    pe = pe2d.reshape(time_padded, fea)[:time]
    return pe[None, :, :]


_PE_CACHE: dict = {}


def _is_concrete(a) -> bool:
    try:
        return not isinstance(a, jax.core.Tracer)
    except Exception:
        return False


def positional_encoding(x: jax.Array, max_len: int = 2500, *,
                        dtype=jnp.float32) -> jax.Array:
    """Forward pass of PositionalEncoding.

    Args:
      x: (batch, time, fea) array. Only shapes are used (matches the PyTorch
         module: input values never affect the output).
      max_len: maximum supported sequence length (checked only).
      dtype: output dtype (float32 matches PyTorch; pass bf16 to halve the
             writeback bytes when the consumer is bf16).

    Returns:
      (1, time, fea) positional-encoding table.
    """
    _, time, fea = x.shape
    assert 0 < time <= max_len, "sequence length exceeds max_len"

    key = (time, fea, jnp.dtype(dtype).name)
    cached = _PE_CACHE.get(key)
    if cached is not None:
        return cached

    pe = _build_pe_table(time, fea, dtype)
    if _is_concrete(pe):
        _PE_CACHE[key] = pe        # table depends only on shapes -> reuse
    # TODO(synk): callers that also want the add fused can consume this table
    # inside their own kernel instead of a separate elementwise add.
    return pe


# --------------------------------------------------------------------------- #
# Reference + self-test
# --------------------------------------------------------------------------- #
def _reference(time: int, fea: int) -> jnp.ndarray:
    """Plain-JAX reference mirroring the PyTorch __init__ buffer build."""
    positions = jnp.arange(0, time, dtype=jnp.float32)[:, None]
    denominator = jnp.exp(
        jnp.arange(0, fea, 2, dtype=jnp.float32) * (-math.log(10000.0) / fea)
    )
    pe = jnp.zeros((time, fea), dtype=jnp.float32)
    pe = pe.at[:, 0::2].set(jnp.sin(positions * denominator))
    pe = pe.at[:, 1::2].set(jnp.cos(positions * denominator))
    return pe[None, :, :]


if __name__ == "__main__":
    key = jax.random.PRNGKey(0)
    batch, time, fea = 2, 16, 32
    x = jax.random.normal(key, (batch, time, fea), dtype=jnp.float32)

    out = jax.block_until_ready(positional_encoding(x))
    ref = _reference(time, fea)
    assert out.shape == (1, time, fea), out.shape
    assert out.dtype == jnp.float32
    assert jnp.allclose(out, ref, atol=1e-5, rtol=1e-5), "mismatch vs reference"

    # Masked last block, lcm lane-packing (fea=48 -> W=384), and unpacked
    # (fea=128) paths, all at small shapes.
    for t2, f2 in [(37, 32), (19, 48), (20, 128)]:
        x2 = jax.random.normal(key, (1, t2, f2), dtype=jnp.float32)
        out2 = jax.block_until_ready(positional_encoding(x2))
        assert out2.shape == (1, t2, f2), (out2.shape, t2, f2)
        assert jnp.allclose(out2, _reference(t2, f2), atol=1e-5, rtol=1e-5), (t2, f2)

    print("KERNEL_OK")
</pallas_src>

<mosaic_0001>
module attributes {stable_mosaic.version = 11 : i64} {
  func.func @_pe_kernel(%arg0: i32, %arg1: memref<1x128xf32, #tpu.memory_space<vmem>>, %arg2: memref<1x128xf32, #tpu.memory_space<vmem>>, %arg3: memref<1x128xf32, #tpu.memory_space<vmem>>, %arg4: memref<4x128xf32, #tpu.memory_space<vmem>>) attributes {dimension_semantics = [#tpu.dimension_semantics<parallel>], iteration_bounds = array<i64: 1>, scalar_prefetch = 0 : i64, scratch_operands = 0 : i64, tpu.core_type = #tpu.core_type<tc>, window_params = [{pipeline_mode = #tpu.pipeline_mode<synchronous>, transform_indices = @transform_0, window_bounds = array<i64: 1, 128>}, {pipeline_mode = #tpu.pipeline_mode<synchronous>, transform_indices = @transform_1, window_bounds = array<i64: 1, 128>}, {pipeline_mode = #tpu.pipeline_mode<synchronous>, transform_indices = @transform_2, window_bounds = array<i64: 1, 128>}, {transform_indices = @transform_3, window_bounds = array<i64: 4, 128>}]} {
    %0 = tpu.iota {dimensions = array<i32: 0>} : vector<4x1xi32>
    %c4_i32 = arith.constant 4 : i32
    %1 = arith.muli %arg0, %c4_i32 : i32
    %2 = vector.broadcast %1 : i32 to vector<4x1xi32>
    %3 = arith.addi %2, %0 : vector<4x1xi32>
    %c4_i32_0 = arith.constant 4 : i32
    %4 = vector.broadcast %c4_i32_0 : i32 to vector<4x1xi32>
    %5 = arith.muli %3, %4 : vector<4x1xi32>
    %6 = arith.sitofp %5 : vector<4x1xi32> to vector<4x1xf32>
    %c0 = arith.constant 0 : index
    %c0_1 = arith.constant 0 : index
    %7 = vector.load %arg1[%c0, %c0_1] : memref<1x128xf32, #tpu.memory_space<vmem>>, vector<1x128xf32>
    %8 = vector.broadcast %6 : vector<4x1xf32> to vector<4x128xf32>
    %9 = vector.broadcast %7 : vector<1x128xf32> to vector<4x128xf32>
    %10 = arith.addf %8, %9 : vector<4x128xf32>
    %c0_2 = arith.constant 0 : index
    %c0_3 = arith.constant 0 : index
    %11 = vector.load %arg2[%c0_2, %c0_3] : memref<1x128xf32, #tpu.memory_space<vmem>>, vector<1x128xf32>
    %12 = vector.broadcast %11 : vector<1x128xf32> to vector<4x128xf32>
    %13 = arith.mulf %10, %12 : vector<4x128xf32>
    %c0_4 = arith.constant 0 : index
    %c0_5 = arith.constant 0 : index
    %14 = vector.load %arg3[%c0_4, %c0_5] : memref<1x128xf32, #tpu.memory_space<vmem>>, vector<1x128xf32>
    %15 = vector.broadcast %14 : vector<1x128xf32> to vector<4x128xf32>
    %16 = arith.addf %13, %15 : vector<4x128xf32>
    %17 = math.sin %16 : vector<4x128xf32>
    %c0_6 = arith.constant 0 : index
    %c0_7 = arith.constant 0 : index
    %18 = vector.load %arg4[%c0_6, %c0_7] : memref<4x128xf32, #tpu.memory_space<vmem>>, vector<4x128xf32>
    tpu.vector_store %arg4[%c0_6, %c0_7], %17 {strides = array<i32>} : memref<4x128xf32, #tpu.memory_space<vmem>>, vector<4x128xf32>,
    return
  }
  func.func @transform_0(%arg0: i32) -> (i32, i32) {
    %c0_i32 = arith.constant 0 : i32
    %c0_i32_0 = arith.constant 0 : i32
    %c0_i32_1 = arith.constant 0 : i32
    return %c0_i32, %c0_i32_0 : i32, i32
  }
  func.func @transform_1(%arg0: i32) -> (i32, i32) {
    %c0_i32 = arith.constant 0 : i32
    %c0_i32_0 = arith.constant 0 : i32
    %c0_i32_1 = arith.constant 0 : i32
    return %c0_i32, %c0_i32_0 : i32, i32
  }
  func.func @transform_2(%arg0: i32) -> (i32, i32) {
    %c0_i32 = arith.constant 0 : i32
    %c0_i32_0 = arith.constant 0 : i32
    %c0_i32_1 = arith.constant 0 : i32
    return %c0_i32, %c0_i32_0 : i32, i32
  }
  func.func @transform_3(%arg0: i32) -> (i32, i32) {
    %c0_i32 = arith.constant 0 : i32
    %c0_i32_0 = arith.constant 0 : i32
    return %arg0, %c0_i32 : i32, i32
  }
}

</mosaic_0001>

<llo_original>
// kernel: tpu_custom_call.1
$region0: #{tpu_custom_call.1}
  #allocation0 [shape = 'u32[]', space=smem, size = 0x4, offset = 0x4, fixed_abs, tag = 'smem constant byte address 0x4 - core index']
  #allocation1 [shape = 'u32[144,128]{1,0:T(1,128)}', space=vmem, size = 0x12000, scoped, tag = 'internal scratch']
  %s0 = inlined_call_operand.hbm [shape: f32[1,128], index: 0, kind: input, shape index: {}]
  %s1 = inlined_call_operand.vmem [shape: f32[1,128], index: 1, kind: input, shape index: {}]
  %s2 = inlined_call_operand.vmem [shape: f32[1,128], index: 2, kind: input, shape index: {}]
  %s3 = inlined_call_operand.hbm [shape: f32[4,128], index: 3, kind: output, shape index: {}]
  %s4 = sld [smem:[#allocation0]]
  $region26: #{tpu_custom_call.1} parent=0
    _
  %s6 = ssub.s32 1, %s4
  %s7 = scalar_select 0, %s6, %s4
  $region1: #{tpu_custom_call.1} parent=0
    #allocation2 [shape = 'u8[512]{0}', space=vmem, size = 0x400, scoped, tag = 'input window, operand 0, single buffered']
    #allocation3 [shape = 's32[1]{0}', space=sflag, size = 0x4, scoped, tag = 'scoped memory for tpu_custom_call.1']
    #allocation4 [shape = 's32[1]{0}', space=sflag, size = 0x4, scoped, tag = 'scoped memory for tpu_custom_call.1']
    #allocation5 [shape = 'u8[2048]{0}', space=vmem, size = 0x800, scoped, tag = 'output window, operand 0, single buffered']
    %8 = vsyncpa [#allocation3], 0
    %9 = vsyncpa [#allocation4], 0
    // Predicated region
    $region2: #{tpu_custom_call.1} parent=1 // pred_check
      _
    $region3: #{tpu_custom_call.1} parent=1 // pred_check_branch
      %11 = sbr.rel (0) target = $region5
    $region4: #{tpu_custom_call.1} parent=1 // pred_region
      %s13 = ssub.s32 16, 16
      %14 = vsyncadd [#allocation3], %s13
      %s16 = sshll.u32 [#allocation2], 4
      %s17 = int_to_ptr.vmem [resolvable:$true] %s16
      %19 = dma.hbm_to_vmem [thread:$0]  %s0, 16, %s17, [#allocation3]
    $region5: #{tpu_custom_call.1} parent=1 // pred_fallthru
      _
    // Predicated region
    $region6: #{tpu_custom_call.1} parent=1 // pred_check
      _
    $region7: #{tpu_custom_call.1} parent=1 // pred_check_branch
      %21 = sbr.rel (0) target = $region9
    $region8: #{tpu_custom_call.1} parent=1 // pred_region
      _
    $region9: #{tpu_custom_call.1} parent=1 // pred_fallthru
      _
    // Predicated region
    $region10: #{tpu_custom_call.1} parent=1 // pred_check
      _
    $region11: #{tpu_custom_call.1} parent=1 // pred_check_branch
      %23 = sbr.rel (0) target = $region13
    $region12: #{tpu_custom_call.1} parent=1 // pred_region
      _
    $region13: #{tpu_custom_call.1} parent=1 // pred_fallthru
      _
    // Predicated region
    $region14: #{tpu_custom_call.1} parent=1 // pred_check
      _
    $region15: #{tpu_custom_call.1} parent=1 // pred_check_branch
      %25 = sbr.rel (0) target = $region17
    $region16: #{tpu_custom_call.1} parent=1 // pred_region
      %26 = dma.done [#allocation3], 16
    $region17: #{tpu_custom_call.1} parent=1 // pred_fallthru
      _
    %v27 = vlaneseq
    %v28 = vshrl.u32 %v27, 7
    %s29 = smul.u32 0, 4
    %v30 = vstv %s29
    %v31 = vadd.s32 %v30, %v28
    %v32 = vmul.u32 %v31, 4
    %v33 = vcvt.s32.f32 %v32
    %v34 = vld [vmem:[#allocation2] sm:$0x1]
    %v36 = vlaneseq
    %v37 = vshrl.u32 %v36, 7
    %v38 = vsub.s32 0, %v37
    %v39 = vrot.slane %v34, %v38
    %v41 = vadd.f32 %v33, %v39
    %v42 = vld [vmem:[%s1] sm:$0x1]
    %v44 = vlaneseq
    %v45 = vshrl.u32 %v44, 7
    %v46 = vsub.s32 0, %v45
    %v47 = vrot.slane %v42, %v46
    %v49 = vmul.f32 %v41, %v47
    %v50 = vld [vmem:[%s2] sm:$0x1]
    %v52 = vlaneseq
    %v53 = vshrl.u32 %v52, 7
    %v54 = vsub.s32 0, %v53
    %v55 = vrot.slane %v50, %v54
    %v57 = vadd.f32 %v49, %v55
    %v58 = vand.u32 2147483647, %v57
    %vm59 = vcmp.le.f32.partialorder %v58, 0.7853982
    %vm60 = vcmp.lt.s32.totalorder %v57, 0
    %v61 = vand.u32 %v57, 2139095040
    %v62 = vshrl.u32 %v61, 23
    %v63 = vsub.s32 %v62, 127
    %v64 = vand.u32 2147483647, %v57
    %v65 = vand.u32 %v64, 8388607
    %v66 = vor.u32 %v65, 8388608
    %v67 = vsub.s32 0, %v66
    %v68 = vadd.s32 %v63, 1
    %vm69 = vcmp.gt.s32.totalorder %v68, 0
    %v70 = vsel %vm69, %v68, 0
    %v71 = vshrl.u32 %v70, 5
    %v72 = vand.u32 %v70, 31
    %v73 = vsub.s32 32, %v72
    %v74 = vshrl.u32 683565275, %v73
    %v75 = vshll.u32 683565275, %v72
    %v76 = vshrl.u32 2475754826, %v73
    %v77 = vor.u32 %v75, %v76
    %v78 = vshll.u32 2475754826, %v72
    %v79 = vshrl.u32 2131351028, %v73
    %v80 = vor.u32 %v78, %v79
    %v81 = vshll.u32 2131351028, %v72
    %v82 = vshrl.u32 2102212464, %v73
    %v83 = vor.u32 %v81, %v82
    %v84 = vshll.u32 2102212464, %v72
    %v85 = vshrl.u32 920167782, %v73
    %v86 = vor.u32 %v84, %v85
    %v87 = vshll.u32 920167782, %v72
    %v88 = vshrl.u32 1326507024, %v73
    %v89 = vor.u32 %v87, %v88
    %vm90 = vcmp.lt.s32.totalorder %v71, 1
    %vm91 = vcmp.lt.s32.totalorder %v71, 2
    %vm92 = vcmp.lt.s32.totalorder %v71, 3
    %vm93 = vcmp.lt.s32.totalorder %v71, 4
    %v94 = vsel %vm90, %v74, %v77
    %v95 = vsel %vm93, %v83, 2102212464
    %v96 = vsel %vm92, %v80, %v95
    %v97 = vsel %vm91, %v94, %v96
    %v98 = vsel %vm90, %v77, %v80
    %v99 = vsel %vm93, %v86, 920167782
    %v100 = vsel %vm92, %v83, %v99
    %v101 = vsel %vm91, %v98, %v100
    %v102 = vsel %vm90, %v80, %v83
    %v103 = vsel %vm93, %v89, 1326507024
    %v104 = vsel %vm92, %v86, %v103
    %v105 = vsel %vm91, %v102, %v104
    %v106 = vshll.u32 %v66, 8
    %v107 = vmul.u32.u64.compose %v106, %v105
    %v108 = vextract.low.u32 %v107
    %v109 = vextract.high.u32 %v107
    %v110 = vmul.u32.u64.compose %v106, %v101
    %v111 = vextract.low.u32 %v110
    %v112 = vextract.high.u32 %v110
    %v113 = vmul.u32 %v106, %v97
    %v114 = vadd.s32 %v109, %v111
    %vm115 = vc.u32 %v109, %v111
    %v116 = vadd.s32 %v112, 1
    %v117 = vsel %vm115, %v116, %v112
    %v118 = vadd.s32 %v113, %v117
    %v119 = vadd.s32 %v118, 536870912
    %v120 = vshrl.u32 %v119, 30
    %v121 = vshll.u32 %v120, 30
    %v122 = vsub.s32 %v118, %v121
    %vm123 = vcmp.lt.s32.totalorder %v122, 0
    %v124 = vsub.s32 0, %v122
    %v125 = vsel %vm123, %v124, %v122
    %v126 = vclz %v125
    %v127 = vsub.s32 %v126, 2
    %vm128 = vcmp.gt.s32.totalorder 0, %v127
    %v129 = vsel %vm128, 0, %v127
    %v130 = vsub.s32 32, %v129
    %v131 = vshll.u32 %v122, %v129
    %v132 = vshrl.u32 %v114, %v130
    %v133 = vor.u32 %v131, %v132
    %v134 = vsub.s32 4294967266, %v129
    %v135 = vadd.s32 %v134, 127
    %v136 = vshll.u32 %v135, 23
    %v137 = vor.u32 4788187, %v136
    %v138 = vand.u32 2147483647, %v137
    %v140 = vcvt.s32.f32 %v133
    %v141 = vmul.f32 %v140, %v138
    %v142 = vxor.u32 %v141, 2147483648
    %v143 = vsel %vm60, %v142, %v141
    %v144 = vsub.s32 4, %v120
    %v145 = vsel %vm60, %v144, %v120
    %v146 = vsel %vm59, %v57, %v143
    %v147 = vsel %vm59, 0, %v145
    %v148 = vcosq.f32.pop %v146
    %v149 = vsinq.f32.pop %v146
    %vm150 = vweird.f32 %v57
    %v151 = vadd.s32 %v147, 3
    %v152 = vand.u32 %v151, 3
    %vm153 = vcmp.lt.s32.totalorder %v152, 2
    %vm154 = vcmp.eq.s32.totalorder %v152, 0
    %v155 = vxor.u32 %v149, 2147483648
    %v156 = vsel %vm154, %v148, %v155
    %vm157 = vcmp.eq.s32.totalorder %v152, 2
    %v158 = vxor.u32 %v148, 2147483648
    %v159 = vsel %vm157, %v158, %v149
    %v160 = vsel %vm153, %v156, %v159
    %v161 = vsel %vm150, nan, %v160
    %162 = vst [vmem:[#allocation5] sm:$0xf] %v161
    // Predicated region
    $region18: #{tpu_custom_call.1} parent=1 // pred_check
      _
    $region19: #{tpu_custom_call.1} parent=1 // pred_check_branch
      %164 = sbr.rel (0) target = $region21
    $region20: #{tpu_custom_call.1} parent=1 // pred_region
      %s166 = ssub.s32 64, 64
      %167 = vsyncadd [#allocation4], %s166
      %s169 = sshll.u32 [#allocation5], 4
      %s170 = int_to_ptr.vmem [resolvable:$true] %s169
      %172 = dma.vmem_to_hbm [thread:$0]  %s170, 64, %s3, [#allocation4]
    $region21: #{tpu_custom_call.1} parent=1 // pred_fallthru
      _
    // Predicated region
    $region22: #{tpu_custom_call.1} parent=1 // pred_check
      _
    $region23: #{tpu_custom_call.1} parent=1 // pred_check_branch
      %174 = sbr.rel (0) target = $region25
    $region24: #{tpu_custom_call.1} parent=1 // pred_region
      %175 = dma.done [#allocation4], 64
    $region25: #{tpu_custom_call.1} parent=1 // pred_fallthru
      _
    %176 = vsyncpa [#allocation3], 1
    %177 = vsyncpa [#allocation4], 1

</llo_original>
